<compile_context>
chip_gen: v7x
topology: tpu7x:2x2x1
jax: 0.10.0
libtpu: 0.0.40
codegen_flags: <defaults>
</compile_context>

<pallas_src>
import functools

import jax
import jax.numpy as jnp
from jax.experimental import pallas as pl
from jax.experimental.pallas import tpu as pltpu

# TODO(synk): args.min_variance comes from the CLI in the original script; fixed to 1e-3 here.
MIN_VARIANCE = 1e-3
# eps used inside adf.Softmax's normalizing constant (its forward() default).
SOFTMAX_EPS = 1e-5
# eps of SoftmaxHeteroscedasticLoss.forward.
LOSS_EPS = 1e-5


def _loss_kernel(mean_ref, var_ref, labels_ref, out_ref, *,
                 batch_size, block_cols, min_variance, softmax_eps, eps,
                 mask_padding):
    """One (C, TB) column block (batch on lanes, classes on sublanes) -> scalar partial sum."""
    i = pl.program_id(0)

    fm = mean_ref[...].astype(jnp.float32)          # (C, TB) feature means
    fv = var_ref[...].astype(jnp.float32)           # (C, TB) feature variances

    # --- ADF softmax (log-normal moment matching); class axis = sublanes (axis 0) ---
    # NOTE: no max-subtraction, matching PyTorch adf.Softmax exactly (exp can overflow
    # for very large logits -- identical behavior to the reference).
    e_mean = jnp.exp(fm + 0.5 * fv)                              # exp(log_gaussian_mean)
    # exp(fv) - 1 matches the reference bit-for-bit; jnp.expm1 would be numerically
    # safer for tiny variances but deviates from the PyTorch path.
    lg_var = (e_mean * e_mean) * (jnp.exp(fv) - 1.0)             # log_gaussian_variance

    constant = jnp.sum(e_mean, axis=0, keepdims=True) + softmax_eps   # (1, TB)
    # Single EUP reciprocal (avoids the multi-op exact-divide lowering on VALU+EUP).
    inv_c = pl.reciprocal(constant, approx=True)
    out_mean = e_mean * inv_c
    out_var = lg_var * (inv_c * inv_c) + min_variance            # keep_variance_fn

    # --- one_hot_pred_from_label (class index rides the sublane axis) ---
    labels = labels_ref[...]                                     # (1, TB) int32
    row = jax.lax.broadcasted_iota(jnp.int32, out_mean.shape, 0)
    y_true = jnp.where(row == labels, 1.0, 0.0)

    # --- heteroscedastic loss; the 0.5 factors and 1/(B*C) are folded into the
    #     wrapper-side scale so the kernel sums the raw per-element quantity. ---
    vpe = out_var + eps
    precision = 1.0 / vpe            # exact divide: keeps tight parity with the reference
    loss_elems = precision * (y_true - out_mean) ** 2 + jnp.log(vpe)

    if mask_padding:
        # Zero contributions of columns added by wrapper-side batch padding.
        col = jax.lax.broadcasted_iota(jnp.int32, (1, block_cols), 1) + i * block_cols
        loss_elems = jnp.where(col < batch_size, loss_elems, 0.0)

    # Per-block partial sum (sublane + cross-lane reduce rides the otherwise-idle XLU).
    # The final (tiny) reduce happens in the wrapper, so the grid axis stays fully
    # "parallel" -> both TensorCores on v7x; neutral on single-TC v5e/v6e.
    out_ref[0, 0] = jnp.sum(loss_elems)


def _tpu_vmem_capacity_bytes():
    """Physical VMEM per TensorCore (128 MiB v5e/v6e, 64 MiB v7x); conservative fallback."""
    try:
        return int(pltpu.get_tpu_info().vmem_capacity_bytes)
    except Exception:
        return 64 << 20


def _choose_block_cols(B, C, budget_bytes):
    """Largest lane block whose double-buffered inputs (features + labels) fit the budget."""
    # 2 feature inputs * 2 pipeline buffers * padded sublanes * 4 B
    # + 1 label input  * 2 pipeline buffers * 8 padded sublanes * 4 B
    per_col = 2 * 2 * 4 * max(C, 8) + 2 * 8 * 4
    if B * per_col <= budget_bytes:
        return B                              # whole batch: one block, zero grid overhead
    cols = budget_bytes // per_col
    # >=2048-lane floor (multiples of 512): per-step overhead ~0.35 us makes tiny
    # blocks overhead-dominated; wrapper pads B up to a multiple instead of shrinking.
    return max((cols // 512) * 512, 2048)


def softmax_heteroscedastic_loss(features_mean, features_variance, targets, *,
                                 class_major=False,
                                 min_variance=MIN_VARIANCE,
                                 softmax_eps=SOFTMAX_EPS,
                                 eps=LOSS_EPS,
                                 block_cols=None):
    """features_mean/variance: (B, C) as in the PyTorch module, or (C, B) if class_major=True
    (preferred -- avoids a full HBM copy-transpose per input)."""
    if class_major:
        fm_t, fv_t = features_mean, features_variance            # already (C, B)
        C, B = fm_t.shape
    else:
        # NOTE(perf): .T is a separate XLA copy-transpose (full HBM read+write per
        # input -- roughly 2x this HBM-bound kernel's own traffic).  Produce (C, B)
        # activations upstream and pass class_major=True to avoid it.
        B, C = features_mean.shape
        fm_t = features_mean.T
        fv_t = features_variance.T

    labels = targets.astype(jnp.int32).reshape(1, B)

    vmem_cap = _tpu_vmem_capacity_bytes()
    if block_cols is not None:
        tb = int(block_cols)
    else:
        tb = _choose_block_cols(B, C, vmem_cap // 4)

    if tb >= B:
        tb = B                                 # single block == full array dims: always legal
        num_blocks = 1
    else:
        assert tb % 128 == 0, "partial batch blocks must be multiples of 128 lanes"
        num_blocks = pl.cdiv(B, tb)
    b_pad = num_blocks * tb

    if b_pad != B:
        # Pad (rare: only huge or awkward B with multi-block tiling); padded columns
        # are masked inside the kernel, so zeros are safe filler.
        pad = b_pad - B
        fm_t = jnp.pad(fm_t, ((0, 0), (0, pad)))
        fv_t = jnp.pad(fv_t, ((0, 0), (0, pad)))
        labels = jnp.pad(labels, ((0, 0), (0, pad)))

    kernel = functools.partial(
        _loss_kernel,
        batch_size=B,
        block_cols=tb,
        min_variance=float(min_variance),
        softmax_eps=float(softmax_eps),
        eps=float(eps),
        mask_padding=(b_pad != B),
    )

    # NOTE(perf, v5e): if DMA is ever exposed at the chosen tb with a multi-block grid,
    # bump the two feature BlockSpecs to pipeline_mode=pl.Buffered(3).
    partials = pl.pallas_call(
        kernel,
        out_shape=jax.ShapeDtypeStruct((num_blocks, 1), jnp.float32),
        grid_spec=pltpu.PrefetchScalarGridSpec(
            num_scalar_prefetch=0,
            grid=(num_blocks,),
            in_specs=[
                pl.BlockSpec((C, tb), lambda i: (0, i)),   # feature means   (C, B_pad)
                pl.BlockSpec((C, tb), lambda i: (0, i)),   # feature vars    (C, B_pad)
                pl.BlockSpec((1, tb), lambda i: (0, i)),   # labels, lane-dense (1, B_pad)
            ],
            out_specs=pl.BlockSpec((1, 1), lambda i: (i, 0),
                                   memory_space=pltpu.SMEM),
        ),
        compiler_params=pltpu.CompilerParams(
            dimension_semantics=("parallel",),             # independent partial sums
            vmem_limit_bytes=vmem_cap // 2),
    )(fm_t, fv_t, labels)

    # Trace-time constant scale: folds the two 0.5 factors and 1/(B*C); no divides.
    scale = 0.5 / float(B * C)
    return jnp.sum(partials) * scale


def _reference(features_mean, features_variance, targets,
               min_variance=MIN_VARIANCE, softmax_eps=SOFTMAX_EPS, eps=LOSS_EPS):
    """Pure-JAX reference mirroring the PyTorch module."""
    fm = features_mean.astype(jnp.float32)
    fv = features_variance.astype(jnp.float32)
    lgm = fm + 0.5 * fv
    lgv = 2.0 * lgm
    lgm = jnp.exp(lgm)
    lgv = jnp.exp(lgv) * (jnp.exp(fv) - 1.0)
    constant = jnp.sum(lgm, axis=1, keepdims=True) + softmax_eps
    mean = lgm / constant
    var = lgv / (constant ** 2) + min_variance
    y_true = jax.nn.one_hot(targets, fm.shape[1], dtype=jnp.float32)
    precision = 1.0 / (var + eps)
    return jnp.mean(0.5 * precision * (y_true - mean) ** 2 + 0.5 * jnp.log(var + eps))


if __name__ == "__main__":
    key = jax.random.PRNGKey(0)
    k1, k2, k3 = jax.random.split(key, 3)

    # Tolerances: approx EUP reciprocal for the softmax denominator + f32 reassociation
    # (blockwise sums, folded 0.5 factors) vs the single-pass pure-JAX reference.
    RTOL = ATOL = 5e-3

    # Small EEG-classifier-like shape: batch=8, num_classes=4.
    B, C = 8, 4
    fm = jax.random.normal(k1, (B, C), dtype=jnp.float32)
    fv = jax.random.uniform(k2, (B, C), dtype=jnp.float32, minval=0.05, maxval=0.5)
    tg = jax.random.randint(k3, (B,), 0, C, dtype=jnp.int32)

    loss = jax.block_until_ready(softmax_heteroscedastic_loss(fm, fv, tg))
    ref = _reference(fm, fv, tg)
    assert jnp.allclose(loss, ref, rtol=RTOL, atol=ATOL), (loss, ref)

    # Preferred class-major path: no wrapper copy-transpose (identical semantics).
    loss_cm = jax.block_until_ready(
        softmax_heteroscedastic_loss(fm.T, fv.T, tg, class_major=True))
    assert jnp.allclose(loss_cm, ref, rtol=RTOL, atol=ATOL), (loss_cm, ref)

    # Multi-block path: grid > 1, parallel per-block partial sums, wrapper-side padding
    # of an awkward batch (450 -> 512) with in-kernel masking.
    B2 = 450
    fm2 = jax.random.normal(k1, (B2, C), dtype=jnp.float32)
    fv2 = jax.random.uniform(k2, (B2, C), dtype=jnp.float32, minval=0.05, maxval=0.5)
    tg2 = jax.random.randint(k3, (B2,), 0, C, dtype=jnp.int32)
    loss2 = jax.block_until_ready(
        softmax_heteroscedastic_loss(fm2, fv2, tg2, block_cols=128))
    ref2 = _reference(fm2, fv2, tg2)
    assert jnp.allclose(loss2, ref2, rtol=RTOL, atol=ATOL), (loss2, ref2)

    # bf16 inputs (halves the dominant HBM read traffic on v5e/v6e); math stays f32.
    fm3 = fm2.astype(jnp.bfloat16)
    fv3 = fv2.astype(jnp.bfloat16)
    loss3 = jax.block_until_ready(softmax_heteroscedastic_loss(fm3, fv3, tg2))
    ref3 = _reference(fm3.astype(jnp.float32), fv3.astype(jnp.float32), tg2)
    assert jnp.allclose(loss3, ref3, rtol=RTOL, atol=ATOL), (loss3, ref3)

    print("KERNEL_OK")
</pallas_src>

<mosaic_0001>
module attributes {stable_mosaic.version = 11 : i64} {
  func.func @_loss_kernel(%arg0: i32, %arg1: memref<4x8xf32, #tpu.memory_space<vmem>>, %arg2: memref<4x8xf32, #tpu.memory_space<vmem>>, %arg3: memref<1x8xi32, #tpu.memory_space<vmem>>, %arg4: memref<1x1xf32, #tpu.memory_space<smem>>) attributes {dimension_semantics = [#tpu.dimension_semantics<parallel>], iteration_bounds = array<i64: 1>, scalar_prefetch = 0 : i64, scratch_operands = 0 : i64, tpu.core_type = #tpu.core_type<tc>, window_params = [{transform_indices = @transform_0, window_bounds = array<i64: 4, 8>}, {transform_indices = @transform_1, window_bounds = array<i64: 4, 8>}, {transform_indices = @transform_2, window_bounds = array<i64: 1, 8>}, {transform_indices = @transform_3, window_bounds = array<i64: 1, 1>}]} {
    %c0 = arith.constant 0 : index
    %c0_0 = arith.constant 0 : index
    %0 = vector.load %arg1[%c0, %c0_0] : memref<4x8xf32, #tpu.memory_space<vmem>>, vector<4x8xf32>
    %c0_1 = arith.constant 0 : index
    %c0_2 = arith.constant 0 : index
    %1 = vector.load %arg2[%c0_1, %c0_2] : memref<4x8xf32, #tpu.memory_space<vmem>>, vector<4x8xf32>
    %cst = arith.constant 5.000000e-01 : f32
    %2 = vector.broadcast %cst : f32 to vector<4x8xf32>
    %3 = arith.mulf %2, %1 : vector<4x8xf32>
    %4 = arith.addf %0, %3 : vector<4x8xf32>
    %5 = math.exp %4 : vector<4x8xf32>
    %6 = arith.mulf %5, %5 : vector<4x8xf32>
    %7 = math.exp %1 : vector<4x8xf32>
    %cst_3 = arith.constant 1.000000e+00 : f32
    %8 = vector.broadcast %cst_3 : f32 to vector<4x8xf32>
    %9 = arith.subf %7, %8 : vector<4x8xf32>
    %10 = arith.mulf %6, %9 : vector<4x8xf32>
    %cst_4 = arith.constant dense<0.000000e+00> : vector<8xf32>
    %11 = vector.multi_reduction <add>, %5, %cst_4 [0] : vector<4x8xf32> to vector<8xf32>
    %12 = vector.shape_cast %11 : vector<8xf32> to vector<1x8xf32>
    %cst_5 = arith.constant 9.99999974E-6 : f32
    %13 = vector.broadcast %cst_5 : f32 to vector<1x8xf32>
    %14 = arith.addf %12, %13 : vector<1x8xf32>
    %15 = tpu.reciprocal %14 {approx = true} : vector<1x8xf32> -> vector<1x8xf32>
    %16 = vector.broadcast %15 : vector<1x8xf32> to vector<4x8xf32>
    %17 = arith.mulf %5, %16 : vector<4x8xf32>
    %18 = arith.mulf %15, %15 : vector<1x8xf32>
    %19 = vector.broadcast %18 : vector<1x8xf32> to vector<4x8xf32>
    %20 = arith.mulf %10, %19 : vector<4x8xf32>
    %cst_6 = arith.constant 1.000000e-03 : f32
    %21 = vector.broadcast %cst_6 : f32 to vector<4x8xf32>
    %22 = arith.addf %20, %21 : vector<4x8xf32>
    %c0_7 = arith.constant 0 : index
    %c0_8 = arith.constant 0 : index
    %23 = vector.load %arg3[%c0_7, %c0_8] : memref<1x8xi32, #tpu.memory_space<vmem>>, vector<1x8xi32>
    %24 = tpu.iota {dimensions = array<i32: 0>} : vector<4x8xi32>
    %25 = vector.broadcast %23 : vector<1x8xi32> to vector<4x8xi32>
    %26 = arith.cmpi eq, %24, %25 : vector<4x8xi32>
    %cst_9 = arith.constant 1.000000e+00 : f32
    %cst_10 = arith.constant 0.000000e+00 : f32
    %27 = vector.broadcast %cst_9 : f32 to vector<4x8xf32>
    %28 = vector.broadcast %cst_10 : f32 to vector<4x8xf32>
    %29 = arith.select %26, %27, %28 : vector<4x8xi1>, vector<4x8xf32>
    %cst_11 = arith.constant 9.99999974E-6 : f32
    %30 = vector.broadcast %cst_11 : f32 to vector<4x8xf32>
    %31 = arith.addf %22, %30 : vector<4x8xf32>
    %cst_12 = arith.constant 1.000000e+00 : f32
    %32 = vector.broadcast %cst_12 : f32 to vector<4x8xf32>
    %33 = arith.divf %32, %31 : vector<4x8xf32>
    %34 = arith.subf %29, %17 : vector<4x8xf32>
    %35 = arith.mulf %34, %34 : vector<4x8xf32>
    %36 = arith.mulf %33, %35 : vector<4x8xf32>
    %37 = math.log %31 : vector<4x8xf32>
    %38 = arith.addf %36, %37 : vector<4x8xf32>
    %39 = vector.shape_cast %38 : vector<4x8xf32> to vector<1x4x8xf32>
    %cst_13 = arith.constant dense<0.000000e+00> : vector<1xf32>
    %40 = vector.multi_reduction <add>, %39, %cst_13 [1, 2] : vector<1x4x8xf32> to vector<1xf32>
    %41 = vector.shape_cast %40 : vector<1xf32> to vector<1x1x1xf32>
    %42 = vector.extract %41[0, 0, 0] : f32 from vector<1x1x1xf32>
    %c0_14 = arith.constant 0 : index
    %c0_15 = arith.constant 0 : index
    %43 = memref.load %arg4[%c0_14, %c0_15] : memref<1x1xf32, #tpu.memory_space<smem>>
    memref.store %42, %arg4[%c0_14, %c0_15] : memref<1x1xf32, #tpu.memory_space<smem>>
    return
  }
  func.func @transform_0(%arg0: i32) -> (i32, i32) {
    %c0_i32 = arith.constant 0 : i32
    %c0_i32_0 = arith.constant 0 : i32
    return %c0_i32, %arg0 : i32, i32
  }
  func.func @transform_1(%arg0: i32) -> (i32, i32) {
    %c0_i32 = arith.constant 0 : i32
    %c0_i32_0 = arith.constant 0 : i32
    return %c0_i32, %arg0 : i32, i32
  }
  func.func @transform_2(%arg0: i32) -> (i32, i32) {
    %c0_i32 = arith.constant 0 : i32
    %c0_i32_0 = arith.constant 0 : i32
    return %c0_i32, %arg0 : i32, i32
  }
  func.func @transform_3(%arg0: i32) -> (i32, i32) {
    %c0_i32 = arith.constant 0 : i32
    %c0_i32_0 = arith.constant 0 : i32
    return %arg0, %c0_i32 : i32, i32
  }
}

</mosaic_0001>

<llo_original>
// kernel: tpu_custom_call.1
$region0: #{tpu_custom_call.1}
  #allocation0 [shape = 'u32[]', space=smem, size = 0x4, offset = 0x4, fixed_abs, tag = 'smem constant byte address 0x4 - core index']
  #allocation1 [shape = 'u32[144,128]{1,0:T(1,128)}', space=vmem, size = 0x12000, scoped, tag = 'internal scratch']
  %s0 = inlined_call_operand.hbm [shape: f32[4,8], index: 0, kind: input, shape index: {}]
  %s1 = inlined_call_operand.hbm [shape: f32[4,8], index: 1, kind: input, shape index: {}]
  %s2 = inlined_call_operand.vmem [shape: s32[1,8], index: 2, kind: input, shape index: {}]
  %s3 = inlined_call_operand.hbm [shape: f32[1,1], index: 3, kind: output, shape index: {}]
  %s4 = sld [smem:[#allocation0]]
  $region30: #{tpu_custom_call.1} parent=0
    _
  %s6 = ssub.s32 1, %s4
  %s7 = scalar_select 0, %s6, %s4
  $region1: #{tpu_custom_call.1} parent=0
    #allocation2 [shape = 'u8[2048]{0}', space=vmem, size = 0x800, scoped, tag = 'input window, operand 0, single buffered']
    #allocation3 [shape = 's32[1]{0}', space=sflag, size = 0x4, scoped, tag = 'scoped memory for tpu_custom_call.1']
    #allocation4 [shape = 's32[1]{0}', space=sflag, size = 0x4, scoped, tag = 'scoped memory for tpu_custom_call.1']
    #allocation5 [shape = 'u8[2048]{0}', space=vmem, size = 0x800, scoped, tag = 'input window, operand 1, single buffered']
    #allocation6 [shape = 's32[1]{0}', space=sflag, size = 0x4, scoped, tag = 'scoped memory for tpu_custom_call.1']
    #allocation7 [shape = 'u8[512]{0}', space=smem, size = 0x200, scoped, tag = 'output window, operand 0, single buffered']
    %8 = vsyncpa [#allocation3], 0
    %9 = vsyncpa [#allocation6], 0
    %10 = vsyncpa [#allocation4], 0
    // Predicated region
    $region2: #{tpu_custom_call.1} parent=1 // pred_check
      _
    $region3: #{tpu_custom_call.1} parent=1 // pred_check_branch
      %12 = sbr.rel (0) target = $region5
    $region4: #{tpu_custom_call.1} parent=1 // pred_region
      %s14 = ssub.s32 64, 64
      %15 = vsyncadd [#allocation3], %s14
      %s17 = sshll.u32 [#allocation2], 4
      %s18 = int_to_ptr.vmem [resolvable:$true] %s17
      %20 = dma.hbm_to_vmem [thread:$0]  %s0, 64, %s18, [#allocation3]
    $region5: #{tpu_custom_call.1} parent=1 // pred_fallthru
      _
    // Predicated region
    $region6: #{tpu_custom_call.1} parent=1 // pred_check
      _
    $region7: #{tpu_custom_call.1} parent=1 // pred_check_branch
      %22 = sbr.rel (0) target = $region9
    $region8: #{tpu_custom_call.1} parent=1 // pred_region
      %s24 = ssub.s32 64, 64
      %25 = vsyncadd [#allocation6], %s24
      %s27 = sshll.u32 [#allocation5], 4
      %s28 = int_to_ptr.vmem [resolvable:$true] %s27
      %30 = dma.hbm_to_vmem [thread:$0]  %s1, 64, %s28, [#allocation6]
    $region9: #{tpu_custom_call.1} parent=1 // pred_fallthru
      _
    // Predicated region
    $region10: #{tpu_custom_call.1} parent=1 // pred_check
      _
    $region11: #{tpu_custom_call.1} parent=1 // pred_check_branch
      %32 = sbr.rel (0) target = $region13
    $region12: #{tpu_custom_call.1} parent=1 // pred_region
      _
    $region13: #{tpu_custom_call.1} parent=1 // pred_fallthru
      _
    // Predicated region
    $region14: #{tpu_custom_call.1} parent=1 // pred_check
      _
    $region15: #{tpu_custom_call.1} parent=1 // pred_check_branch
      %34 = sbr.rel (0) target = $region17
    $region16: #{tpu_custom_call.1} parent=1 // pred_region
      %35 = dma.done [#allocation3], 64
    $region17: #{tpu_custom_call.1} parent=1 // pred_fallthru
      _
    // Predicated region
    $region18: #{tpu_custom_call.1} parent=1 // pred_check
      _
    $region19: #{tpu_custom_call.1} parent=1 // pred_check_branch
      %37 = sbr.rel (0) target = $region21
    $region20: #{tpu_custom_call.1} parent=1 // pred_region
      %38 = dma.done [#allocation6], 64
    $region21: #{tpu_custom_call.1} parent=1 // pred_fallthru
      _
    %v39 = vld [vmem:[#allocation2] sm:$0xf]
    %v40 = vld [vmem:[#allocation5] sm:$0xf]
    %v41 = vmul.f32 %v40, 0.5
    %v42 = vadd.f32 %v39, %v41
    %v43 = vmul.f32 %v42, 1.442695
    %v44 = vpow.pop %v43
    %v45 = vmul.f32 %v44, %v44
    %v46 = vmul.f32 %v40, 1.442695
    %v47 = vpow.pop %v46
    %v48 = vsub.f32 %v47, 1.0
    %v49 = vmul.f32 %v45, %v48
    %vm50 = vcmask 60416
    %v51 = vsel %vm50, %v44, 0.0
    %v52 = vrot.slane %v51, 4
    %v53 = vadd.f32 %v51, %v52
    %v54 = vrot.slane %v53, 2
    %v55 = vadd.f32 %v53, %v54
    %v56 = vrot.slane %v55, 1
    %v57 = vadd.f32 %v55, %v56
    %v58 = vadd.f32 %v57, 1e-05
    %v59 = vrcp.pop %v58
    %v60 = vmul.f32 %v44, %v59
    %v61 = vmul.f32 %v59, %v59
    %v62 = vmul.f32 %v49, %v61
    %v63 = vadd.f32 %v62, 0.001
    %v64 = vld [vmem:[%s2] sm:$0x1]
    %v65 = vlaneseq
    %v66 = vshrl.u32 %v65, 7
    %v67 = vlaneseq
    %v68 = vshrl.u32 %v67, 7
    %v69 = vsub.s32 0, %v68
    %v70 = vrot.slane %v64, %v69
    %vm71 = vcmp.eq.s32.totalorder %v66, %v70
    %v72 = vsel %vm71, 1.0, 0.0
    %v73 = vadd.f32 %v63, 1e-05
    %v74 = vrcp.pop %v73
    %v75 = vmul.f32 1.0, %v74
    %v76 = vsub.f32 %v72, %v60
    %v77 = vmul.f32 %v76, %v76
    %v78 = vmul.f32 %v75, %v77
    %v79 = vlog2.pop %v73
    %v80 = vmul.f32 %v79, 0.6931472
    %v81 = vadd.f32 %v78, %v80
    %v82 = vsel %vm50, %v81, 0.0
    %83 = vadd.xlane.f32.xlu0 %v82
    %v84 = vpop.xlane.xlu0 %83
    %v85 = vrot.slane %v84, 4
    %v86 = vadd.f32 %v84, %v85
    %v87 = vrot.slane %v86, 2
    %v88 = vadd.f32 %v86, %v87
    %v89 = vrot.slane %v88, 1
    %v90 = vadd.f32 %v88, %v89
    %s91 = vtos %v90
    %s92 = scalar_lea.smem [#allocation7], 0
    %93 = sst [smem:[%s92]] %s91
    // Predicated region
    $region22: #{tpu_custom_call.1} parent=1 // pred_check
      _
    $region23: #{tpu_custom_call.1} parent=1 // pred_check_branch
      %95 = sbr.rel (0) target = $region25
    $region24: #{tpu_custom_call.1} parent=1 // pred_region
      %s97 = ssub.s32 16, 16
      %98 = vsyncadd [#allocation4], %s97
      %101 = dma.smem_to_hbm [#allocation7], 16, %s3, [#allocation4]
    $region25: #{tpu_custom_call.1} parent=1 // pred_fallthru
      _
    // Predicated region
    $region26: #{tpu_custom_call.1} parent=1 // pred_check
      _
    $region27: #{tpu_custom_call.1} parent=1 // pred_check_branch
      %103 = sbr.rel (0) target = $region29
    $region28: #{tpu_custom_call.1} parent=1 // pred_region
      %104 = dma.done [#allocation4], 16
    $region29: #{tpu_custom_call.1} parent=1 // pred_fallthru
      _
    %105 = sfence
    %106 = vsyncpa [#allocation3], 1
    %107 = vsyncpa [#allocation6], 1
    %108 = vsyncpa [#allocation4], 1

</llo_original>
